<compile_context>
chip_gen: v7x
topology: tpu7x:2x2x1
jax: 0.10.0
libtpu: 0.0.40
codegen_flags: <defaults>
</compile_context>

<pallas_src>
import jax
import jax.numpy as jnp
from jax import lax
from jax.experimental import pallas as pl
from jax.experimental.pallas import tpu as pltpu

_EPS = 1e-12  # matches torch.nn.functional.normalize default eps


def contrastive_kernel(scale_ref, bias_ref, x_ref, w_ref, o_ref):
    """One (batch, spatial-tile) step: x-norm + matmul + scale/bias, fused.

    x_ref: (1, C, thw)  raw (un-normalized) channels-major spatial tile
    w_ref: (1, K, C)    pre-L2-normalized text embeddings for this batch
    o_ref: (1, K, thw)  similarity logits tile (lane-dense)
    scale_ref, bias_ref: (1,) f32 scalars in SMEM (scale = exp(logit_scale))
    """
    x = x_ref[0]    # (C, thw)
    wn = w_ref[0]   # (K, C), rows already unit-norm

    # Per-column inverse L2 norm over channels. Accumulate in f32 so bf16
    # inputs keep accuracy; rsqrt goes to the EUP (free slot alongside MXU).
    xf = x.astype(jnp.float32)
    sumsq = jnp.sum(xf * xf, axis=0, keepdims=True)              # (1, thw)
    # Clamping the squared norm with eps^2 == torch's max(norm, eps) clamp
    # (sqrt is monotone).  Also keeps padded / OOB columns finite.
    inv_norm = lax.rsqrt(jnp.maximum(sumsq, _EPS * _EPS))        # (1, thw)

    # (K, C) @ (C, thw) on the MXU with f32 accumulation, using the RAW x
    # tile: scaling columns of the RHS commutes with the matmul, so the
    # normalization is applied in the epilogue instead.
    s = jnp.dot(wn, x, preferred_element_type=jnp.float32)       # (K, thw)

    # Epilogue: x-normalization + logit scale folded into one broadcast FMA.
    o_ref[0] = (s * (inv_norm * scale_ref[0]) + bias_ref[0]).astype(o_ref.dtype)


def _select_spatial_tile(HW, B, C, K, x_itemsize, w_itemsize, vmem_bytes, thw_cap):
    """Pick the spatial tile width (multiple of 128) and number of tiles."""
    if HW <= 128:
        return HW, 1  # single block covering the full extent (allowed by Pallas)

    hw128 = pl.cdiv(HW, 128)                 # HW in units of 128 lanes

    # Per-lane-column VMEM: x double-buffer + out double-buffer + f32 matmul
    # result + norm vectors.  The w double-buffer is thw-independent.
    per_col = 2 * C * x_itemsize + 2 * K * x_itemsize + 4 * K + 16
    w_buf = 2 * K * C * w_itemsize
    budget = max(0, vmem_bytes // 2 - w_buf)
    cap_from_vmem = max(128, (budget // per_col) // 128 * 128)
    cap = max(128, min(thw_cap, cap_from_vmem))

    num_tiles = pl.cdiv(hw128, cap // 128)
    # v7x megacore: keep at least ~4 grid steps when the problem allows it so
    # both TensorCores get work (no-op on v5e/v6e single-TC chips).
    num_tiles = max(num_tiles, min(hw128, pl.cdiv(4, B)))
    # Balance tiles to minimize padding to the tile multiple (waste < 128
    # lanes total instead of up to thw-128).
    thw = 128 * pl.cdiv(hw128, num_tiles)
    num_tiles = pl.cdiv(HW, thw)
    return thw, num_tiles


def contrastive_head_pallas(x, w, logit_scale, bias, *, thw_cap=2048):
    """x: (B, C, H, W).  w: (B, K, C).  logit_scale, bias: scalars (learnable)."""
    B, C, H, W = x.shape
    K = w.shape[1]
    HW = H * W

    # Guard user-supplied cap to a multiple of 128 (lane-dense stores / (8,128)).
    thw_cap = max(128, (int(thw_cap) // 128) * 128)

    try:
        vmem_bytes = int(pltpu.get_tpu_info().vmem_capacity_bytes)
    except Exception:
        vmem_bytes = 64 * 1024 * 1024  # conservative fallback (v7x per-core VMEM)

    # Hoisted w normalization: w is only B*K*C elements, so this is negligible
    # HBM traffic and avoids redoing the (K, C) reduction once per spatial tile.
    w32 = w.astype(jnp.float32)
    w_nrm = jnp.sqrt(jnp.sum(w32 * w32, axis=-1, keepdims=True))
    wn = (w32 / jnp.maximum(w_nrm, _EPS)).astype(w.dtype)

    # NCHW is already the matmul layout: per batch, (C, HW) via a view reshape.
    x_tok = x.reshape(B, C, HW)

    thw, num_hw_tiles = _select_spatial_tile(
        HW, B, C, K, x.dtype.itemsize, wn.dtype.itemsize, vmem_bytes, thw_cap)

    scale = jnp.exp(logit_scale).reshape(1).astype(jnp.float32)
    bias_arr = jnp.asarray(bias).reshape(1).astype(jnp.float32)

    cost = pl.CostEstimate(
        flops=2 * B * K * C * HW,
        bytes_accessed=(x.size * x.dtype.itemsize
                        + wn.size * wn.dtype.itemsize
                        + B * K * HW * x.dtype.itemsize),
        transcendentals=0,
    )

    out_tok = pl.pallas_call(
        contrastive_kernel,
        out_shape=jax.ShapeDtypeStruct((B, K, HW), x.dtype),
        grid=(B, num_hw_tiles),
        in_specs=[
            pl.BlockSpec(memory_space=pltpu.MemorySpace.SMEM),       # scale
            pl.BlockSpec(memory_space=pltpu.MemorySpace.SMEM),       # bias
            pl.BlockSpec((1, C, thw), lambda b, j: (b, 0, j)),       # raw x tile
            pl.BlockSpec((1, K, C), lambda b, j: (b, 0, 0)),         # unit-norm w
        ],
        out_specs=pl.BlockSpec((1, K, thw), lambda b, j: (b, 0, j)),
        compiler_params=pltpu.CompilerParams(
            dimension_semantics=("parallel", "parallel"),
            vmem_limit_bytes=min(vmem_bytes * 3 // 4, 100 * 1024 * 1024),
        ),
        cost_estimate=cost,
    )(scale, bias_arr, x_tok, wn)

    return out_tok.reshape(B, K, H, W)


def contrastive_head_reference(x, w, logit_scale, bias):
    """Pure-JAX reference matching the PyTorch forward."""
    xn = x / jnp.maximum(jnp.sqrt(jnp.sum(x * x, axis=1, keepdims=True)), _EPS)
    wn = w / jnp.maximum(jnp.sqrt(jnp.sum(w * w, axis=-1, keepdims=True)), _EPS)
    s = jnp.einsum('bchw,bkc->bkhw', xn, wn)
    return s * jnp.exp(logit_scale) + bias


if __name__ == "__main__":
    key = jax.random.PRNGKey(0)
    k_x, k_w = jax.random.split(key, 2)

    # Small demo shapes: batch=2, channels=4, spatial=16x16, K=8 text embeddings.
    B, C, H, W = 2, 4, 16, 16
    K = 8

    x = jax.random.normal(k_x, (B, C, H, W), dtype=jnp.float32)
    w = jax.random.normal(k_w, (B, K, C), dtype=jnp.float32)

    # Module parameter defaults: bias = -10.0, logit_scale = log(1/0.07).
    bias = jnp.array(-10.0, dtype=jnp.float32)
    logit_scale = jnp.log(jnp.array(1.0 / 0.07, dtype=jnp.float32))

    out = jax.block_until_ready(contrastive_head_pallas(x, w, logit_scale, bias))
    ref = contrastive_head_reference(x, w, logit_scale, bias)

    assert out.shape == (B, K, H, W)
    assert jnp.allclose(out, ref, atol=1e-4, rtol=1e-4), "mismatch vs reference"

    print("KERNEL_OK")
</pallas_src>

<mosaic_0001>
module attributes {stable_mosaic.version = 11 : i64} {
  func.func @contrastive_kernel(%arg0: i32, %arg1: i32, %arg2: memref<1xf32, #tpu.memory_space<smem>>, %arg3: memref<1xf32, #tpu.memory_space<smem>>, %arg4: memref<1x4x128xf32, #tpu.memory_space<vmem>>, %arg5: memref<1x8x4xf32, #tpu.memory_space<vmem>>, %arg6: memref<1x8x128xf32, #tpu.memory_space<vmem>>) attributes {dimension_semantics = [#tpu.dimension_semantics<parallel>, #tpu.dimension_semantics<parallel>], iteration_bounds = array<i64: 2, 2>, scalar_prefetch = 0 : i64, scratch_operands = 0 : i64, tpu.core_type = #tpu.core_type<tc>, window_params = [{transform_indices = @transform_0, window_bounds = array<i64: 1>}, {transform_indices = @transform_1, window_bounds = array<i64: 1>}, {transform_indices = @transform_2, window_bounds = array<i64: 1, 4, 128>}, {transform_indices = @transform_3, window_bounds = array<i64: 1, 8, 4>}, {transform_indices = @transform_4, window_bounds = array<i64: 1, 8, 128>}]} {
    %c0 = arith.constant 0 : index
    %c0_0 = arith.constant 0 : index
    %c0_1 = arith.constant 0 : index
    %0 = vector.load %arg4[%c0, %c0_0, %c0_1] : memref<1x4x128xf32, #tpu.memory_space<vmem>>, vector<1x4x128xf32>
    %1 = vector.shape_cast %0 : vector<1x4x128xf32> to vector<4x128xf32>
    %c0_2 = arith.constant 0 : index
    %c0_3 = arith.constant 0 : index
    %c0_4 = arith.constant 0 : index
    %2 = vector.load %arg5[%c0_2, %c0_3, %c0_4] : memref<1x8x4xf32, #tpu.memory_space<vmem>>, vector<1x8x4xf32>
    %3 = vector.shape_cast %2 : vector<1x8x4xf32> to vector<8x4xf32>
    %4 = arith.mulf %1, %1 : vector<4x128xf32>
    %cst = arith.constant dense<0.000000e+00> : vector<128xf32>
    %5 = vector.multi_reduction <add>, %4, %cst [0] : vector<4x128xf32> to vector<128xf32>
    %6 = vector.shape_cast %5 : vector<128xf32> to vector<1x128xf32>
    %cst_5 = arith.constant 1.000000e-24 : f32
    %7 = vector.broadcast %cst_5 : f32 to vector<1x128xf32>
    %8 = arith.maximumf %6, %7 : vector<1x128xf32>
    %9 = math.rsqrt %8 : vector<1x128xf32>
    %cst_6 = arith.constant dense<0.000000e+00> : vector<8x128xf32>
    %10 = tpu.matmul %3, %1, %cst_6 {dimension_numbers = #tpu.dot_dimension_numbers<[1], [0], [0], [1], [0, 0, 1, 1], [], []>} : vector<8x4xf32>, vector<4x128xf32>, vector<8x128xf32> -> vector<8x128xf32>
    %c0_7 = arith.constant 0 : index
    %11 = memref.load %arg2[%c0_7] : memref<1xf32, #tpu.memory_space<smem>>
    %12 = vector.broadcast %11 : f32 to vector<1x128xf32>
    %13 = arith.mulf %9, %12 : vector<1x128xf32>
    %14 = vector.broadcast %13 : vector<1x128xf32> to vector<8x128xf32>
    %15 = arith.mulf %10, %14 : vector<8x128xf32>
    %c0_8 = arith.constant 0 : index
    %16 = memref.load %arg3[%c0_8] : memref<1xf32, #tpu.memory_space<smem>>
    %17 = vector.broadcast %16 : f32 to vector<8x128xf32>
    %18 = arith.addf %15, %17 : vector<8x128xf32>
    %c0_9 = arith.constant 0 : index
    %c0_10 = arith.constant 0 : index
    %c0_11 = arith.constant 0 : index
    %19 = vector.load %arg6[%c0_9, %c0_10, %c0_11] : memref<1x8x128xf32, #tpu.memory_space<vmem>>, vector<1x8x128xf32>
    %20 = vector.shape_cast %19 : vector<1x8x128xf32> to vector<8x128xf32>
    %21 = vector.shape_cast %18 : vector<8x128xf32> to vector<1x8x128xf32>
    tpu.vector_store %arg6[%c0_9, %c0_10, %c0_11], %21 {strides = array<i32>} : memref<1x8x128xf32, #tpu.memory_space<vmem>>, vector<1x8x128xf32>,
    return
  }
  func.func @transform_0(%arg0: i32, %arg1: i32) -> i32 {
    %c0_i32 = arith.constant 0 : i32
    %c0_i32_0 = arith.constant 0 : i32
    return %c0_i32 : i32
  }
  func.func @transform_1(%arg0: i32, %arg1: i32) -> i32 {
    %c0_i32 = arith.constant 0 : i32
    %c0_i32_0 = arith.constant 0 : i32
    return %c0_i32 : i32
  }
  func.func @transform_2(%arg0: i32, %arg1: i32) -> (i32, i32, i32) {
    %c0_i32 = arith.constant 0 : i32
    %c0_i32_0 = arith.constant 0 : i32
    return %arg0, %c0_i32, %arg1 : i32, i32, i32
  }
  func.func @transform_3(%arg0: i32, %arg1: i32) -> (i32, i32, i32) {
    %c0_i32 = arith.constant 0 : i32
    %c0_i32_0 = arith.constant 0 : i32
    %c0_i32_1 = arith.constant 0 : i32
    return %arg0, %c0_i32, %c0_i32_0 : i32, i32, i32
  }
  func.func @transform_4(%arg0: i32, %arg1: i32) -> (i32, i32, i32) {
    %c0_i32 = arith.constant 0 : i32
    %c0_i32_0 = arith.constant 0 : i32
    return %arg0, %c0_i32, %arg1 : i32, i32, i32
  }
}

</mosaic_0001>

<llo_original>
// kernel: tpu_custom_call.1
$region0: #{tpu_custom_call.1}
  #allocation0 [shape = 'u32[]', space=smem, size = 0x4, offset = 0x4, fixed_abs, tag = 'smem constant byte address 0x4 - core index']
  #allocation1 [shape = 'u32[144,128]{1,0:T(1,128)}', space=vmem, size = 0x12000, scoped, tag = 'internal scratch']
  #allocation2 [shape = 'f32[1]{0:T(128)S(6)}', space=smem, size = 0x200, scoped, tag = 'scoped memory for tpu_custom_call.1']
  #allocation3 [shape = 'f32[1]{0:T(128)S(6)}', space=smem, size = 0x200, scoped, tag = 'scoped memory for tpu_custom_call.1']
  %s0 = inlined_call_operand.<no memory space> [shape: f32[1], index: 0, kind: input, shape index: {}]
  %s1 = inlined_call_operand.<no memory space> [shape: f32[1], index: 1, kind: input, shape index: {}]
  %s2 = inlined_call_operand.vmem [shape: f32[2,4,256], index: 2, kind: input, shape index: {}]
  %s3 = inlined_call_operand.vmem [shape: f32[2,8,4], index: 3, kind: input, shape index: {}]
  %s4 = inlined_call_operand.hbm [shape: f32[2,8,256], index: 4, kind: output, shape index: {}]
  %s5 = sld [smem:[#allocation0]]
  $region49: #{tpu_custom_call.1} parent=0
    _
  %s7 = ssub.s32 1, %s5
  %s8 = scalar_select 0, %s7, %s5
  %9 = sst [smem:[#allocation2]] %s0
  %10 = sst [smem:[#allocation3]] %s1
  $region1: #{tpu_custom_call.1} parent=0
    #allocation4 [shape = 'u8[8192]{0}', space=vmem, size = 0x2000, scoped, tag = 'output window, operand 0']
    #allocation5 [shape = 's32[2]{0}', space=sflag, size = 0x8, scoped, tag = 'scoped memory for tpu_custom_call.1']
    %11 = vsyncpa [#allocation5], 0
    %s12 = scalar_lea.sflag [#allocation5], 1
    %13 = vsyncpa %s12, 0
    loop: start=0, step=1, limit=6
    $region2: #{tpu_custom_call.1} parent=1 // loop_pre_header
      _
    $region3: #{tpu_custom_call.1} parent=1 // loop_header
      %s15 = sphi 0, %s19
      %p16 = scmp.ge.s32.totalorder %s15, 6
      %s22 = sphi 0, %s34
      %s23 = sphi 0, %s30
      %s24 = sphi 0, %s22
      %s25 = sphi 0, %s23
      %s26 = sphi 0, %s24
      %s27 = sphi 0, %s25
      %s35 = sphi 0, %s35
      %s37 = sphi 0, %s35
      %s38 = sphi 0, %s37
      %s52 = sphi 0, %s38
      %s56 = sphi 0, %s56
      %s58 = sphi 0, %s56
      %s59 = sphi 0, %s58
      %s73 = sphi 0, %s59
      %s81 = sphi 0, %s83
      %s84 = sphi 0, %s81
      %s85 = sphi 0, %s84
      %s101 = sphi 0, %s85
      %s107 = sphi 0, %s109
      %s110 = sphi 0, %s107
      %s111 = sphi 0, %s110
      %s127 = sphi 0, %s111
      %s135 = sphi 0, %s137
      %s138 = sphi 0, %s135
      %s139 = sphi 0, %s138
      %s155 = sphi 0, %s139
    $region4: #{tpu_custom_call.1} parent=1 // loop_header_branch
      %18 = sbr.rel (%p16) target = $region8
    $region5: #{tpu_custom_call.1} parent=1 // loop_body
      %s20 = ssub.s32 %s15, 1
      %s21 = ssub.s32 %s15, 2
      %s28 = sadd.s32 1, %s23
      %p29 = scmp.ge.s32.totalorder %s28, 2
      %s30 = scalar_select %p29, 0, %s28
      %s31 = sadd.s32 1, %s22
      %s32 = scalar_select %p29, %s31, %s22
      %p33 = scmp.ge.s32.totalorder %s32, 2
      %s34 = scalar_select %p33, 0, %s32
      %s36 = sadd.s32 %s35, 1
      %p39 = scmp.eq.s32.totalorder %s15, 3
      %p40 = scmp.ne.s32.totalorder %s35, %s37
      %p41 = scmp.eq.s32.totalorder %s15, 0
      %p42 = por %p40, %p41
      %p43 = scmp.ne.s32.totalorder %s35, %s37
      %p44 = scmp.eq.s32.totalorder %s20, 3
      %p45 = por %p43, %p44
      %p46 = scmp.ne.s32.totalorder %s37, %s38
      %p47 = scmp.eq.s32.totalorder %s20, 0
      %p48 = por %p46, %p47
      %p49 = scmp.ne.s32.totalorder %s37, %s38
      %p50 = scmp.eq.s32.totalorder %s21, 3
      %p51 = por %p49, %p50
      %p53 = scmp.ne.s32.totalorder %s38, %s52
      %p54 = scmp.eq.s32.totalorder %s21, 0
      %p55 = por %p53, %p54
      %s57 = sadd.s32 %s56, 1
      %p60 = scmp.eq.s32.totalorder %s15, 3
      %p61 = scmp.ne.s32.totalorder %s56, %s58
      %p62 = scmp.eq.s32.totalorder %s15, 0
      %p63 = por %p61, %p62
      %p64 = scmp.ne.s32.totalorder %s56, %s58
      %p65 = scmp.eq.s32.totalorder %s20, 3
      %p66 = por %p64, %p65
      %p67 = scmp.ne.s32.totalorder %s58, %s59
      %p68 = scmp.eq.s32.totalorder %s20, 0
      %p69 = por %p67, %p68
      %p70 = scmp.ne.s32.totalorder %s58, %s59
      %p71 = scmp.eq.s32.totalorder %s21, 3
      %p72 = por %p70, %p71
      %p74 = scmp.ne.s32.totalorder %s59, %s73
      %p75 = scmp.eq.s32.totalorder %s21, 0
      %p76 = por %p74, %p75
      %s77 = ssub.s32 %s22, %s34
      %s78 = ssub.s32 %s23, %s30
      %s79 = sor.u32 %s77, %s78
      %p80 = scmp.eq.s32.totalorder %s79, 0
      %s82 = sadd.s32 %s81, 1
      %s83 = scalar_select %p80, %s81, %s82
      %p86 = pneg %p80
      %p87 = scmp.eq.s32.totalorder %s15, 3
      %p88 = por %p86, %p87
      %p89 = scmp.ne.s32.totalorder %s81, %s84
      %p90 = scmp.eq.s32.totalorder %s15, 0
      %p91 = por %p89, %p90
      %p92 = scmp.ne.s32.totalorder %s81, %s84
      %p93 = scmp.eq.s32.totalorder %s20, 3
      %p94 = por %p92, %p93
      %p95 = scmp.ne.s32.totalorder %s84, %s85
      %p96 = scmp.eq.s32.totalorder %s20, 0
      %p97 = por %p95, %p96
      %p98 = scmp.ne.s32.totalorder %s84, %s85
      %p99 = scmp.eq.s32.totalorder %s21, 3
      %p100 = por %p98, %p99
      %p102 = scmp.ne.s32.totalorder %s85, %s101
      %p103 = scmp.eq.s32.totalorder %s21, 0
      %p104 = por %p102, %p103
      %s105 = ssub.s32 %s22, %s34
      %p106 = scmp.eq.s32.totalorder %s105, 0
      %s108 = sadd.s32 %s107, 1
      %s109 = scalar_select %p106, %s107, %s108
      %p112 = pneg %p106
      %p113 = scmp.eq.s32.totalorder %s15, 3
      %p114 = por %p112, %p113
      %p115 = scmp.ne.s32.totalorder %s107, %s110
      %p116 = scmp.eq.s32.totalorder %s15, 0
      %p117 = por %p115, %p116
      %p118 = scmp.ne.s32.totalorder %s107, %s110
      %p119 = scmp.eq.s32.totalorder %s20, 3
      %p120 = por %p118, %p119
      %p121 = scmp.ne.s32.totalorder %s110, %s111
      %p122 = scmp.eq.s32.totalorder %s20, 0
      %p123 = por %p121, %p122
      %p124 = scmp.ne.s32.totalorder %s110, %s111
      %p125 = scmp.eq.s32.totalorder %s21, 3
      %p126 = por %p124, %p125
      %p128 = scmp.ne.s32.totalorder %s111, %s127
      %p129 = scmp.eq.s32.totalorder %s21, 0
      %p130 = por %p128, %p129
      %s131 = ssub.s32 %s22, %s34
      %s132 = ssub.s32 %s23, %s30
      %s133 = sor.u32 %s131, %s132
      %p134 = scmp.eq.s32.totalorder %s133, 0
      %s136 = sadd.s32 %s135, 1
      %s137 = scalar_select %p134, %s135, %s136
      %p140 = pneg %p134
      %p141 = scmp.eq.s32.totalorder %s15, 3
      %p142 = por %p140, %p141
      %p143 = scmp.ne.s32.totalorder %s135, %s138
      %p144 = scmp.eq.s32.totalorder %s15, 0
      %p145 = por %p143, %p144
      %p146 = scmp.ne.s32.totalorder %s135, %s138
      %p147 = scmp.eq.s32.totalorder %s20, 3
      %p148 = por %p146, %p147
      %p149 = scmp.ne.s32.totalorder %s138, %s139
      %p150 = scmp.eq.s32.totalorder %s20, 0
      %p151 = por %p149, %p150
      %p152 = scmp.ne.s32.totalorder %s138, %s139
      %p153 = scmp.eq.s32.totalorder %s21, 3
      %p154 = por %p152, %p153
      %p156 = scmp.ne.s32.totalorder %s139, %s155
      %p157 = scmp.eq.s32.totalorder %s21, 0
      %p158 = por %p156, %p157
      %p159 = scmp.le.s32.totalorder 1, %s15
      %p160 = scmp.lt.s32.totalorder %s15, 5
      %p161 = pnand %p159, %p160
      %p162 = pneg %p161
      // Predicated region
      $region9: #{tpu_custom_call.1} parent=5 // pred_check
        _
      $region10: #{tpu_custom_call.1} parent=5 // pred_check_branch
        %164 = sbr.rel (%p161) target = $region12
      $region11: #{tpu_custom_call.1} parent=5 // pred_region
        %s165 = ssub.s32 %s15, 1
        // Predicated region
        $region13: #{tpu_custom_call.1} parent=11 // pred_check
          %p166 = pneg %p48
        $region14: #{tpu_custom_call.1} parent=11 // pred_check_branch
          %168 = sbr.rel (%p166) target = $region16
        $region15: #{tpu_custom_call.1} parent=11 // pred_region
          _
        $region16: #{tpu_custom_call.1} parent=11 // pred_fallthru
          _
        // Predicated region
        $region17: #{tpu_custom_call.1} parent=11 // pred_check
          %p169 = pneg %p69
        $region18: #{tpu_custom_call.1} parent=11 // pred_check_branch
          %171 = sbr.rel (%p169) target = $region20
        $region19: #{tpu_custom_call.1} parent=11 // pred_region
          _
        $region20: #{tpu_custom_call.1} parent=11 // pred_fallthru
          _
      $region12: #{tpu_custom_call.1} parent=5 // pred_fallthru
        _
      %p172 = scmp.lt.s32.totalorder %s15, 4
      // Predicated region
      $region21: #{tpu_custom_call.1} parent=5 // pred_check
        %p173 = pneg %p172
      $region22: #{tpu_custom_call.1} parent=5 // pred_check_branch
        %175 = sbr.rel (%p173) target = $region24
      $region23: #{tpu_custom_call.1} parent=5 // pred_region
        // Predicated region
        $region25: #{tpu_custom_call.1} parent=23 // pred_check
          %p176 = pneg %p91
        $region26: #{tpu_custom_call.1} parent=23 // pred_check_branch
          %178 = sbr.rel (%p176) target = $region28
        $region27: #{tpu_custom_call.1} parent=23 // pred_region
          %p179 = scmp.lt.s32.totalorder %s22, 1
          %s180 = scalar_select %p179, %s22, 1
          %p181 = scmp.lt.s32.totalorder %s23, 1
          %s182 = scalar_select %p181, %s23, 1
          %s183 = smul.addr %s180, 2
          %s184 = sadd.s32 %s182, %s183
          %s185 = smul.addr %s184, 4
          %s186 = scalar_lea.vmem %s2, %s185
        $region28: #{tpu_custom_call.1} parent=23 // pred_fallthru
          _
        // Predicated region
        $region29: #{tpu_custom_call.1} parent=23 // pred_check
          %p187 = pneg %p117
        $region30: #{tpu_custom_call.1} parent=23 // pred_check_branch
          %189 = sbr.rel (%p187) target = $region32
        $region31: #{tpu_custom_call.1} parent=23 // pred_region
          %p190 = scmp.lt.s32.totalorder %s22, 1
          %s191 = scalar_select %p190, %s22, 1
          %s192 = smul.addr %s191, 8
          %s193 = scalar_lea.vmem %s3, %s192
        $region32: #{tpu_custom_call.1} parent=23 // pred_fallthru
          _
      $region24: #{tpu_custom_call.1} parent=5 // pred_fallthru
        _
      %p194 = scmp.le.s32.totalorder 1, %s15
      %p195 = scmp.lt.s32.totalorder %s15, 5
      %p196 = pnand %p194, %p195
      %p197 = pneg %p196
      // Predicated region
      $region33: #{tpu_custom_call.1} parent=5 // pred_check
        _
      $region34: #{tpu_custom_call.1} parent=5 // pred_check_branch
        %199 = sbr.rel (%p196) target = $region36
      $region35: #{tpu_custom_call.1} parent=5 // pred_region
        %s200 = ssub.s32 %s15, 1
        %p201 = pneg %p48
        %p202 = pneg %p45
        %p203 = pneg %p69
        %p204 = pneg %p66
        %p205 = scmp.lt.s32.totalorder %s24, 1
        %s206 = scalar_select %p205, %s24, 1
        %p207 = scmp.lt.s32.totalorder %s25, 1
        %s208 = scalar_select %p207, %s25, 1
        %s209 = smul.addr %s206, 2
        %s210 = sadd.s32 %s208, %s209
        %s211 = smul.addr %s210, 4
        %s212 = scalar_lea.vmem %s2, %s211
        %p213 = pneg %p97
        %p214 = pneg %p94
        %p215 = scmp.lt.s32.totalorder %s24, 1
        %s216 = scalar_select %p215, %s24, 1
        %s217 = smul.addr %s216, 8
        %s218 = scalar_lea.vmem %s3, %s217
        %p219 = pneg %p123
        %p220 = pneg %p120
        %p221 = pneg %p151
        %p222 = pneg %p148
        %s223 = sand.u32 %s138, 1
        %s224 = scalar_lea.sflag [#allocation5], %s223
        %s225 = sand.u32 %s138, 1
        %s226 = smul.addr %s225, 8
        %s227 = scalar_lea.vmem [#allocation4], %s226
        %p228 = scmp.lt.s32.totalorder %s24, 1
        %s229 = scalar_select %p228, %s24, 1
        %p230 = scmp.lt.s32.totalorder %s25, 1
        %s231 = scalar_select %p230, %s25, 1
        %s232 = smul.addr %s229, 2
        %s233 = sadd.s32 %s231, %s232
        %s234 = smul.addr %s233, 4
        %s235 = scalar_lea.vmem %s2, %s234
        %p236 = scmp.lt.s32.totalorder %s24, 1
        %s237 = scalar_select %p236, %s24, 1
        %s238 = smul.addr %s237, 8
        %s239 = scalar_lea.vmem %s3, %s238
        %v240 = vld [vmem:[%s235] sm:$0xf]
        %v241 = vld [vmem:[%s239] sm:$0xff]
        %v242 = vmul.f32 %v240, %v240
        %vm243 = vcmask 1043456
        %v244 = vsel %vm243, %v242, 0.0
        %v245 = vrot.slane %v244, 4
        %v246 = vadd.f32 %v244, %v245
        %v247 = vrot.slane %v246, 2
        %v248 = vadd.f32 %v246, %v247
        %v249 = vrot.slane %v248, 1
        %v250 = vadd.f32 %v248, %v249
        %v251 = vmax.f32 %v250, 1e-24
        %v252 = vrsqrt.pop %v251
        %vm253 = vcmask 31744
        %v255 = vsel %vm253, %v241, 0
        %v258 = vsel %vm243, %v240, 0
        %260 = vmatprep.subr.mxu0 0.0
        %261 = vmatpush1.msra.mxu0 %v258
        %262 = vmatprep.subr.mxu0 0.0
        %263 = vmatpush1.msra.mxu0 0.0
        %264 = vmatprep.subr.mxu0 0.0
        %265 = vmatpush1.msra.mxu0 0.0
        %266 = vmatprep.subr.mxu0 0.0
        %267 = vmatpush1.msra.mxu0 0.0
        %268 = vmatprep.subr.mxu0 0.0
        %269 = vmatpush1.msra.mxu0 0.0
        %270 = vmatprep.subr.mxu0 0.0
        %271 = vmatpush1.msra.mxu0 0.0
        %272 = vmatprep.subr.mxu0 0.0
        %273 = vmatpush1.msra.mxu0 0.0
        %274 = vmatprep.subr.mxu0 0.0
        %275 = vmatpush1.msra.mxu0 0.0
        %276 = vmatprep.subr.mxu0 0.0
        %277 = vmatpush1.msra.mxu0 0.0
        %278 = vmatprep.subr.mxu0 0.0
        %279 = vmatpush1.msra.mxu0 0.0
        %280 = vmatprep.subr.mxu0 0.0
        %281 = vmatpush1.msra.mxu0 0.0
        %282 = vmatprep.subr.mxu0 0.0
        %283 = vmatpush1.msra.mxu0 0.0
        %284 = vmatprep.subr.mxu0 0.0
        %285 = vmatpush1.msra.mxu0 0.0
        %286 = vmatprep.subr.mxu0 0.0
        %287 = vmatpush1.msra.mxu0 0.0
        %288 = vmatprep.subr.mxu0 0.0
        %289 = vmatpush1.msra.mxu0 0.0
        %290 = vmatprep.subr.mxu0 0.0
        %291 = vmatpush1.msra.mxu0 0.0
        %292 = vmatprep.subr.mxu0 0.0
        %293 = vmatpush1.msra.mxu0 0.0
        %294 = vmatprep.subr.mxu0 0.0
        %295 = vmatpush1.msra.mxu0 0.0
        %296 = vmatprep.subr.mxu0 0.0
        %297 = vmatpush1.msra.mxu0 0.0
        %298 = vmatprep.subr.mxu0 0.0
        %299 = vmatpush1.msra.mxu0 0.0
        %300 = vmatprep.subr.mxu0 0.0
        %301 = vmatpush1.msra.mxu0 0.0
        %302 = vmatprep.subr.mxu0 0.0
        %303 = vmatpush1.msra.mxu0 0.0
        %304 = vmatprep.subr.mxu0 0.0
        %305 = vmatpush1.msra.mxu0 0.0
        %306 = vmatprep.subr.mxu0 0.0
        %307 = vmatpush1.msra.mxu0 0.0
        %308 = vmatprep.subr.mxu0 0.0
        %309 = vmatpush1.msra.mxu0 0.0
        %310 = vmatprep.subr.mxu0 0.0
        %311 = vmatpush1.msra.mxu0 0.0
        %312 = vmatprep.subr.mxu0 0.0
        %313 = vmatpush1.msra.mxu0 0.0
        %314 = vmatprep.subr.mxu0 0.0
        %315 = vmatpush1.msra.mxu0 0.0
        %316 = vmatprep.subr.mxu0 0.0
        %317 = vmatpush1.msra.mxu0 0.0
        %318 = vmatprep.subr.mxu0 0.0
        %319 = vmatpush1.msra.mxu0 0.0
        %320 = vmatprep.subr.mxu0 0.0
        %321 = vmatpush1.msra.mxu0 0.0
        %322 = vmatprep.subr.mxu0 0.0
        %323 = vmatpush1.msra.mxu0 0.0
        %324 = vmatprep.mubr.f32.mxu0 0.0
        %325 = vmatmul.mubr.f32.gmra.mrb[0].mxu0 %v255
        %v326 = vpop.f32.mrb[0].mxu0
        %v327 = vadd.f32 0.0, %v326
        %v328 = vpop.f32.mrb[0].mxu0
        %329 = vdwg.mxu0
        %s330 = sld [smem:[#allocation2]]
        %v331 = vstv %s330
        %v332 = vmul.f32 %v252, %v331
        %v333 = vmul.f32 %v327, %v332
        %s334 = sld [smem:[#allocation3]]
        %v335 = vstv %s334
        %v336 = vadd.f32 %v333, %v335
        %337 = vst [vmem:[%s227] sm:$0xff] %v336
        %s338 = sand.u32 %s138, 1
        %s339 = scalar_lea.sflag [#allocation5], %s338
        %s340 = sand.u32 %s138, 1
        %s341 = smul.addr %s340, 8
        %s342 = scalar_lea.vmem [#allocation4], %s341
        // Predicated region
        $region37: #{tpu_custom_call.1} parent=35 // pred_check
          %p343 = pneg %p148
        $region38: #{tpu_custom_call.1} parent=35 // pred_check_branch
          %345 = sbr.rel (%p343) target = $region40
        $region39: #{tpu_custom_call.1} parent=35 // pred_region
          %s347 = ssub.s32 128, 128
          %348 = vsyncadd %s339, %s347
          %s349 = smul.addr %s24, 2
          %s350 = sadd.s32 %s25, %s349
          %s351 = smul.addr %s350, 128
          %s352 = scalar_lea.hbm %s4, %s351
          %s354 = sshll.u32 %s342, 4
          %s355 = int_to_ptr.vmem [resolvable:$true] %s354
          %357 = dma.vmem_to_hbm [thread:$0]  %s355, 128, %s352, %s339
        $region40: #{tpu_custom_call.1} parent=35 // pred_fallthru
          _
      $region36: #{tpu_custom_call.1} parent=5 // pred_fallthru
        _
      %p358 = scmp.le.s32.totalorder 2, %s15
      // Predicated region
      $region41: #{tpu_custom_call.1} parent=5 // pred_check
        %p359 = pneg %p358
      $region42: #{tpu_custom_call.1} parent=5 // pred_check_branch
        %361 = sbr.rel (%p359) target = $region44
      $region43: #{tpu_custom_call.1} parent=5 // pred_region
        %s362 = ssub.s32 %s15, 2
        // Predicated region
        $region45: #{tpu_custom_call.1} parent=43 // pred_check
          %p363 = pneg %p154
        $region46: #{tpu_custom_call.1} parent=43 // pred_check_branch
          %365 = sbr.rel (%p363) target = $region48
        $region47: #{tpu_custom_call.1} parent=43 // pred_region
          %s366 = sand.u32 %s139, 1
          %s367 = scalar_lea.sflag [#allocation5], %s366
          %s368 = sand.u32 %s139, 1
          %s369 = smul.addr %s368, 8
          %s370 = scalar_lea.vmem [#allocation4], %s369
          %371 = dma.done %s367, 128
        $region48: #{tpu_custom_call.1} parent=43 // pred_fallthru
          _
      $region44: #{tpu_custom_call.1} parent=5 // pred_fallthru
        _
    $region6: #{tpu_custom_call.1} parent=1 // loop_footer
      %s19 = sadd.s32 1, %s15
    $region7: #{tpu_custom_call.1} parent=1 // loop_footer_branch
      %14 = sbr.rel target = $region3
    $region8: #{tpu_custom_call.1} parent=1 // loop_exit
      _
    %372 = vsyncpa [#allocation5], 1
    %s373 = scalar_lea.sflag [#allocation5], 1
    %374 = vsyncpa %s373, 1

</llo_original>
